<compile_context>
chip_gen: v7x
topology: tpu7x:2x2x1
jax: 0.10.0
libtpu: 0.0.40
codegen_flags: <defaults>
</compile_context>

<pallas_src>
import functools

import jax
import jax.numpy as jnp
from jax.experimental import pallas as pl
from jax.experimental.pallas import tpu as pltpu


def _round_up(a, b):
    return ((a + b - 1) // b) * b


def _linreg_kernel(x_ref, w_ref, b_ref, o_ref, *, flat_dim, poly_degree):
    """x_ref: (TB, flat_dim); w_ref: (flat_dim*poly_degree, out_f_pad); b_ref: (1, out_f_pad)."""
    x = x_ref[...]  # keep storage dtype: bf16 feeds the MXU natively on v6e/v7x
    in_features = flat_dim * poly_degree

    if poly_degree == 1:
        acc = jnp.dot(x, w_ref[...], preferred_element_type=jnp.float32)
    elif in_features <= 512:
        # Build concat([x, x^2, ...]) once per tile -> a single matmul with K closer to
        # the MXU's native depth.  Powers computed incrementally (no pow lowering).
        feats = [x]
        xp = x
        for _ in range(poly_degree - 1):
            xp = xp * x
            feats.append(xp)
        xcat = jnp.concatenate(feats, axis=1)
        acc = jnp.dot(xcat, w_ref[...], preferred_element_type=jnp.float32)
    else:
        # Large K: sum per-degree matmuls into an f32 accumulator; weight slices are
        # static, so they are zero-cost ref views.
        acc = jnp.dot(x, w_ref[0:flat_dim, :], preferred_element_type=jnp.float32)
        xp = x
        for d in range(1, poly_degree):
            xp = xp * x
            w_d = w_ref[d * flat_dim:(d + 1) * flat_dim, :]
            acc += jnp.dot(xp, w_d, preferred_element_type=jnp.float32)

    acc = acc + b_ref[...].astype(jnp.float32)
    o_ref[...] = acc.astype(o_ref.dtype)


class CustomLinearRegressionModelPallas:
    def __init__(self, input_dim, output_dim, input_chunk_length,
                 use_polynomial_features=False, poly_degree=1, dropout=0.0,
                 key=None, dtype=jnp.float32):
        self.input_dim = input_dim
        self.output_dim = output_dim
        self.input_chunk_length = input_chunk_length
        self.use_polynomial_features = use_polynomial_features
        self.poly_degree = poly_degree if (use_polynomial_features and poly_degree > 1) else 1
        self.dropout = dropout
        self.dtype = dtype

        self.flat_dim = input_chunk_length * input_dim
        self.in_features = self.flat_dim * self.poly_degree
        self.out_features = input_chunk_length * output_dim
        # Lane-dense output: pad N up to a multiple of 128.
        self.out_features_pad = _round_up(self.out_features, 128)

        if key is None:
            key = jax.random.PRNGKey(0)
        k_w, k_b = jax.random.split(key)
        # Deterministic init matching torch.nn.Linear default: U(-1/sqrt(fan_in), 1/sqrt(fan_in)).
        bound = 1.0 / (self.in_features ** 0.5)
        # Store weight already transposed: (in_features, out_features).
        self.weight_t = jax.random.uniform(
            k_w, (self.in_features, self.out_features), dtype=dtype, minval=-bound, maxval=bound)
        self.bias = jax.random.uniform(
            k_b, (1, self.out_features), dtype=dtype, minval=-bound, maxval=bound)

        # Zero-padded copies used by the kernel (padding columns are sliced off post-call).
        pad_n = self.out_features_pad - self.out_features
        self.weight_t_padded = jnp.pad(self.weight_t, ((0, 0), (0, pad_n)))
        self.bias_padded = jnp.pad(self.bias, ((0, 0), (0, pad_n)))

    def _forward_xla(self, x2d):
        # Plain XLA fallback for tiny shapes where pallas_call launch overhead dominates.
        if self.poly_degree > 1:
            x2d = jnp.concatenate([x2d ** (d + 1) for d in range(self.poly_degree)], axis=1)
        return x2d.astype(jnp.float32) @ self.weight_t.astype(jnp.float32) + self.bias

    def __call__(self, x, use_pallas=True, training=False):
        # x: (batch, input_chunk_length, input_dim)
        if training and self.dropout > 0.0:
            # TODO(synk): in-kernel dropout mask not implemented.
            raise NotImplementedError("training-mode dropout is not implemented in the Pallas path")

        batch = x.shape[0]
        x2d = x.reshape(batch, self.flat_dim)  # row-major flatten, same as torch

        if not use_pallas:
            out2d = self._forward_xla(x2d)
            return out2d.reshape(batch, self.input_chunk_length, self.output_dim).astype(self.dtype)

        # --- batch tiling: align rows to the sublane packing of the dtype, pad last tile ---
        row_align = 16 if self.dtype == jnp.bfloat16 else 8
        tb = min(256, _round_up(batch, row_align))
        batch_padded = _round_up(batch, tb)
        if batch_padded != batch:
            x2d = jnp.pad(x2d, ((0, batch_padded - batch), (0, 0)))
        num_tiles = batch_padded // tb

        out_f_pad = self.out_features_pad
        kernel = functools.partial(
            _linreg_kernel, flat_dim=self.flat_dim, poly_degree=self.poly_degree)

        # VMEM budget: double-buffered x/out tiles + weight + bias. Raise the scoped limit
        # only when the estimate approaches the default (keeps v7x's 64 MiB in mind).
        itemsize = jnp.dtype(self.dtype).itemsize
        vmem_needed = 2 * itemsize * (
            tb * self.flat_dim + self.in_features * out_f_pad + out_f_pad + tb * out_f_pad)
        vmem_limit = None
        if vmem_needed > 24 * 1024 * 1024:
            vmem_limit = min(int(vmem_needed * 1.3), 100 * 1024 * 1024)

        out2d = pl.pallas_call(
            kernel,
            out_shape=jax.ShapeDtypeStruct((batch_padded, out_f_pad), self.dtype),
            grid_spec=pl.GridSpec(
                grid=(num_tiles,),
                in_specs=[
                    # activations: one batch tile per grid step (pipelined)
                    pl.BlockSpec((tb, self.flat_dim), lambda i: (i, 0)),
                    # weight & bias: same block every step -> fetched once, VMEM-resident
                    pl.BlockSpec((self.in_features, out_f_pad), lambda i: (0, 0)),
                    pl.BlockSpec((1, out_f_pad), lambda i: (0, 0)),
                ],
                out_specs=pl.BlockSpec((tb, out_f_pad), lambda i: (i, 0)),
            ),
            compiler_params=pltpu.CompilerParams(
                dimension_semantics=("parallel",),
                vmem_limit_bytes=vmem_limit,
            ),
        )(x2d, self.weight_t_padded, self.bias_padded)

        out2d = out2d[:batch, :self.out_features]
        return out2d.reshape(batch, self.input_chunk_length, self.output_dim)


def _reference(model, x):
    """Pure-JAX reference for validation (unpadded weights)."""
    batch = x.shape[0]
    x2d = x.reshape(batch, model.flat_dim).astype(jnp.float32)
    if model.poly_degree > 1:
        x2d = jnp.concatenate([x2d ** (d + 1) for d in range(model.poly_degree)], axis=1)
    out = x2d @ model.weight_t.astype(jnp.float32) + model.bias.astype(jnp.float32)
    return out.reshape(batch, model.input_chunk_length, model.output_dim)


if __name__ == "__main__":
    key = jax.random.PRNGKey(0)
    k_x1, k_p1, k_x2, k_p2 = jax.random.split(key, 4)

    # Case 1: polynomial expansion enabled (concat-then-single-matmul path).
    batch, input_dim, input_chunk_length, output_dim, poly_degree = 4, 4, 8, 2, 2
    model = CustomLinearRegressionModelPallas(
        input_dim=input_dim, output_dim=output_dim, input_chunk_length=input_chunk_length,
        use_polynomial_features=True, poly_degree=poly_degree, dropout=0.0, key=k_p1)
    x = jax.random.normal(k_x1, (batch, input_chunk_length, input_dim), dtype=jnp.float32)
    out = jax.block_until_ready(model(x, use_pallas=True))
    ref = _reference(model, x)
    assert out.shape == (batch, input_chunk_length, output_dim), out.shape
    assert jnp.allclose(out, ref, atol=1e-5, rtol=1e-5), "poly model mismatch vs reference"

    # Case 2: plain linear (no polynomial features), non-multiple-of-8 batch.
    batch2, input_dim2, chunk2, output_dim2 = 10, 3, 12, 1
    model2 = CustomLinearRegressionModelPallas(
        input_dim=input_dim2, output_dim=output_dim2, input_chunk_length=chunk2,
        use_polynomial_features=False, poly_degree=1, dropout=0.0, key=k_p2)
    x2 = jax.random.normal(k_x2, (batch2, chunk2, input_dim2), dtype=jnp.float32)
    out2 = jax.block_until_ready(model2(x2, use_pallas=True))
    ref2 = _reference(model2, x2)
    assert out2.shape == (batch2, chunk2, output_dim2), out2.shape
    assert jnp.allclose(out2, ref2, atol=1e-5, rtol=1e-5), "plain model mismatch vs reference"

    print("KERNEL_OK")
</pallas_src>

<mosaic_0001>
module attributes {stable_mosaic.version = 11 : i64} {
  func.func @_linreg_kernel(%arg0: i32, %arg1: memref<8x32xf32, #tpu.memory_space<vmem>>, %arg2: memref<64x128xf32, #tpu.memory_space<vmem>>, %arg3: memref<1x128xf32, #tpu.memory_space<vmem>>, %arg4: memref<8x128xf32, #tpu.memory_space<vmem>>) attributes {dimension_semantics = [#tpu.dimension_semantics<parallel>], iteration_bounds = array<i64: 1>, scalar_prefetch = 0 : i64, scratch_operands = 0 : i64, tpu.core_type = #tpu.core_type<tc>, window_params = [{transform_indices = @transform_0, window_bounds = array<i64: 8, 32>}, {pipeline_mode = #tpu.pipeline_mode<synchronous>, transform_indices = @transform_1, window_bounds = array<i64: 64, 128>}, {pipeline_mode = #tpu.pipeline_mode<synchronous>, transform_indices = @transform_2, window_bounds = array<i64: 1, 128>}, {transform_indices = @transform_3, window_bounds = array<i64: 8, 128>}]} {
    %c0 = arith.constant 0 : index
    %c0_0 = arith.constant 0 : index
    %0 = vector.load %arg1[%c0, %c0_0] : memref<8x32xf32, #tpu.memory_space<vmem>>, vector<8x32xf32>
    %1 = arith.mulf %0, %0 : vector<8x32xf32>
    %2 = tpu.concatenate %0, %1 in 1 : vector<8x32xf32>, vector<8x32xf32> -> vector<8x64xf32>
    %c0_1 = arith.constant 0 : index
    %c0_2 = arith.constant 0 : index
    %3 = vector.load %arg2[%c0_1, %c0_2] : memref<64x128xf32, #tpu.memory_space<vmem>>, vector<64x128xf32>
    %cst = arith.constant dense<0.000000e+00> : vector<8x128xf32>
    %4 = tpu.matmul %2, %3, %cst {dimension_numbers = #tpu.dot_dimension_numbers<[1], [0], [0], [1], [0, 0, 1, 1], [], []>} : vector<8x64xf32>, vector<64x128xf32>, vector<8x128xf32> -> vector<8x128xf32>
    %c0_3 = arith.constant 0 : index
    %c0_4 = arith.constant 0 : index
    %5 = vector.load %arg3[%c0_3, %c0_4] : memref<1x128xf32, #tpu.memory_space<vmem>>, vector<1x128xf32>
    %6 = vector.broadcast %5 : vector<1x128xf32> to vector<8x128xf32>
    %7 = arith.addf %4, %6 : vector<8x128xf32>
    %c0_5 = arith.constant 0 : index
    %c0_6 = arith.constant 0 : index
    %8 = vector.load %arg4[%c0_5, %c0_6] : memref<8x128xf32, #tpu.memory_space<vmem>>, vector<8x128xf32>
    tpu.vector_store %arg4[%c0_5, %c0_6], %7 {strides = array<i32>} : memref<8x128xf32, #tpu.memory_space<vmem>>, vector<8x128xf32>,
    return
  }
  func.func @transform_0(%arg0: i32) -> (i32, i32) {
    %c0_i32 = arith.constant 0 : i32
    %c0_i32_0 = arith.constant 0 : i32
    return %arg0, %c0_i32 : i32, i32
  }
  func.func @transform_1(%arg0: i32) -> (i32, i32) {
    %c0_i32 = arith.constant 0 : i32
    %c0_i32_0 = arith.constant 0 : i32
    %c0_i32_1 = arith.constant 0 : i32
    return %c0_i32, %c0_i32_0 : i32, i32
  }
  func.func @transform_2(%arg0: i32) -> (i32, i32) {
    %c0_i32 = arith.constant 0 : i32
    %c0_i32_0 = arith.constant 0 : i32
    %c0_i32_1 = arith.constant 0 : i32
    return %c0_i32, %c0_i32_0 : i32, i32
  }
  func.func @transform_3(%arg0: i32) -> (i32, i32) {
    %c0_i32 = arith.constant 0 : i32
    %c0_i32_0 = arith.constant 0 : i32
    return %arg0, %c0_i32 : i32, i32
  }
}

</mosaic_0001>

<llo_original>
// kernel: tpu_custom_call.1
$region0: #{tpu_custom_call.1}
  #allocation0 [shape = 'u32[]', space=smem, size = 0x4, offset = 0x4, fixed_abs, tag = 'smem constant byte address 0x4 - core index']
  #allocation1 [shape = 'u32[144,128]{1,0:T(1,128)}', space=vmem, size = 0x12000, scoped, tag = 'internal scratch']
  %s0 = inlined_call_operand.hbm [shape: f32[8,32], index: 0, kind: input, shape index: {}]
  %s1 = inlined_call_operand.hbm [shape: f32[64,128], index: 1, kind: input, shape index: {}]
  %s2 = inlined_call_operand.vmem [shape: f32[1,128], index: 2, kind: input, shape index: {}]
  %s3 = inlined_call_operand.hbm [shape: f32[8,128], index: 3, kind: output, shape index: {}]
  %s4 = sld [smem:[#allocation0]]
  $region30: #{tpu_custom_call.1} parent=0
    _
  %s6 = ssub.s32 1, %s4
  %s7 = scalar_select 0, %s6, %s4
  $region1: #{tpu_custom_call.1} parent=0
    #allocation2 [shape = 'u8[4096]{0}', space=vmem, size = 0x1000, scoped, tag = 'input window, operand 0, single buffered']
    #allocation3 [shape = 's32[1]{0}', space=sflag, size = 0x4, scoped, tag = 'scoped memory for tpu_custom_call.1']
    #allocation4 [shape = 's32[1]{0}', space=sflag, size = 0x4, scoped, tag = 'scoped memory for tpu_custom_call.1']
    #allocation5 [shape = 'u8[32768]{0}', space=vmem, size = 0x8000, scoped, tag = 'input window, operand 1, single buffered']
    #allocation6 [shape = 's32[1]{0}', space=sflag, size = 0x4, scoped, tag = 'scoped memory for tpu_custom_call.1']
    #allocation7 [shape = 'u8[4096]{0}', space=vmem, size = 0x1000, scoped, tag = 'output window, operand 0, single buffered']
    %8 = vsyncpa [#allocation3], 0
    %9 = vsyncpa [#allocation6], 0
    %10 = vsyncpa [#allocation4], 0
    // Predicated region
    $region2: #{tpu_custom_call.1} parent=1 // pred_check
      _
    $region3: #{tpu_custom_call.1} parent=1 // pred_check_branch
      %12 = sbr.rel (0) target = $region5
    $region4: #{tpu_custom_call.1} parent=1 // pred_region
      %s14 = ssub.s32 128, 128
      %15 = vsyncadd [#allocation3], %s14
      %s17 = sshll.u32 [#allocation2], 4
      %s18 = int_to_ptr.vmem [resolvable:$true] %s17
      %20 = dma.hbm_to_vmem [thread:$0]  %s0, 128, %s18, [#allocation3]
    $region5: #{tpu_custom_call.1} parent=1 // pred_fallthru
      _
    // Predicated region
    $region6: #{tpu_custom_call.1} parent=1 // pred_check
      _
    $region7: #{tpu_custom_call.1} parent=1 // pred_check_branch
      %22 = sbr.rel (0) target = $region9
    $region8: #{tpu_custom_call.1} parent=1 // pred_region
      %s24 = ssub.s32 1024, 1024
      %25 = vsyncadd [#allocation6], %s24
      %s26 = sshll.u32 [#allocation5], 4
      %s27 = int_to_ptr.vmem [resolvable:$true] %s26
      %32 = dma.hbm_to_vmem [thread:$0]  %s1, 1024, %s27, [#allocation6], 128, 128, 8
    $region9: #{tpu_custom_call.1} parent=1 // pred_fallthru
      _
    // Predicated region
    $region10: #{tpu_custom_call.1} parent=1 // pred_check
      _
    $region11: #{tpu_custom_call.1} parent=1 // pred_check_branch
      %34 = sbr.rel (0) target = $region13
    $region12: #{tpu_custom_call.1} parent=1 // pred_region
      _
    $region13: #{tpu_custom_call.1} parent=1 // pred_fallthru
      _
    // Predicated region
    $region14: #{tpu_custom_call.1} parent=1 // pred_check
      _
    $region15: #{tpu_custom_call.1} parent=1 // pred_check_branch
      %36 = sbr.rel (0) target = $region17
    $region16: #{tpu_custom_call.1} parent=1 // pred_region
      %37 = dma.done [#allocation3], 128
    $region17: #{tpu_custom_call.1} parent=1 // pred_fallthru
      _
    // Predicated region
    $region18: #{tpu_custom_call.1} parent=1 // pred_check
      _
    $region19: #{tpu_custom_call.1} parent=1 // pred_check_branch
      %39 = sbr.rel (0) target = $region21
    $region20: #{tpu_custom_call.1} parent=1 // pred_region
      %40 = dma.done [#allocation6], 1024
    $region21: #{tpu_custom_call.1} parent=1 // pred_fallthru
      _
    %v41 = vld [vmem:[#allocation2] sm:$0xff]
    %v42 = vmul.f32 %v41, %v41
    %44 = vrot.lane.b32.xlu0 %v42, 32
    %v45 = vpop.permute.xlu0 %44
    %vm47 = vcmask 261120
    %v48 = vsel %vm47, %v41, %v45
    %v49 = vld [vmem:[#allocation5] sm:$0xff]
    %v50 = vld [vmem:[#allocation5 + $0x8] sm:$0xff]
    %v51 = vld [vmem:[#allocation5 + $0x10] sm:$0xff]
    %v52 = vld [vmem:[#allocation5 + $0x18] sm:$0xff]
    %v53 = vld [vmem:[#allocation5 + $0x20] sm:$0xff]
    %v54 = vld [vmem:[#allocation5 + $0x28] sm:$0xff]
    %v55 = vld [vmem:[#allocation5 + $0x30] sm:$0xff]
    %v56 = vld [vmem:[#allocation5 + $0x38] sm:$0xff]
    %v57 = vld [vmem:[%s2] sm:$0x1]
    %v59 = vlaneseq
    %v60 = vshrl.u32 %v59, 7
    %v61 = vsub.s32 0, %v60
    %v62 = vrot.slane %v57, %v61
    %vm64 = vcmask 523264
    %v66 = vsel %vm64, %v48, 0
    %68 = vmatprep.subr.mxu0 0.0
    %69 = vmatpush1.msra.mxu0 %v49
    %70 = vmatprep.subr.mxu0 0.0
    %71 = vmatpush1.msra.mxu0 %v50
    %72 = vmatprep.subr.mxu0 0.0
    %73 = vmatpush1.msra.mxu0 %v51
    %74 = vmatprep.subr.mxu0 0.0
    %75 = vmatpush1.msra.mxu0 %v52
    %76 = vmatprep.subr.mxu0 0.0
    %77 = vmatpush1.msra.mxu0 %v53
    %78 = vmatprep.subr.mxu0 0.0
    %79 = vmatpush1.msra.mxu0 %v54
    %80 = vmatprep.subr.mxu0 0.0
    %81 = vmatpush1.msra.mxu0 %v55
    %82 = vmatprep.subr.mxu0 0.0
    %83 = vmatpush1.msra.mxu0 %v56
    %84 = vmatprep.subr.mxu0 0.0
    %85 = vmatpush1.msra.mxu0 0.0
    %86 = vmatprep.subr.mxu0 0.0
    %87 = vmatpush1.msra.mxu0 0.0
    %88 = vmatprep.subr.mxu0 0.0
    %89 = vmatpush1.msra.mxu0 0.0
    %90 = vmatprep.subr.mxu0 0.0
    %91 = vmatpush1.msra.mxu0 0.0
    %92 = vmatprep.subr.mxu0 0.0
    %93 = vmatpush1.msra.mxu0 0.0
    %94 = vmatprep.subr.mxu0 0.0
    %95 = vmatpush1.msra.mxu0 0.0
    %96 = vmatprep.subr.mxu0 0.0
    %97 = vmatpush1.msra.mxu0 0.0
    %98 = vmatprep.subr.mxu0 0.0
    %99 = vmatpush1.msra.mxu0 0.0
    %100 = vmatprep.subr.mxu0 0.0
    %101 = vmatpush1.msra.mxu0 0.0
    %102 = vmatprep.subr.mxu0 0.0
    %103 = vmatpush1.msra.mxu0 0.0
    %104 = vmatprep.subr.mxu0 0.0
    %105 = vmatpush1.msra.mxu0 0.0
    %106 = vmatprep.subr.mxu0 0.0
    %107 = vmatpush1.msra.mxu0 0.0
    %108 = vmatprep.subr.mxu0 0.0
    %109 = vmatpush1.msra.mxu0 0.0
    %110 = vmatprep.subr.mxu0 0.0
    %111 = vmatpush1.msra.mxu0 0.0
    %112 = vmatprep.subr.mxu0 0.0
    %113 = vmatpush1.msra.mxu0 0.0
    %114 = vmatprep.subr.mxu0 0.0
    %115 = vmatpush1.msra.mxu0 0.0
    %116 = vmatprep.subr.mxu0 0.0
    %117 = vmatpush1.msra.mxu0 0.0
    %118 = vmatprep.subr.mxu0 0.0
    %119 = vmatpush1.msra.mxu0 0.0
    %120 = vmatprep.subr.mxu0 0.0
    %121 = vmatpush1.msra.mxu0 0.0
    %122 = vmatprep.subr.mxu0 0.0
    %123 = vmatpush1.msra.mxu0 0.0
    %124 = vmatprep.subr.mxu0 0.0
    %125 = vmatpush1.msra.mxu0 0.0
    %126 = vmatprep.subr.mxu0 0.0
    %127 = vmatpush1.msra.mxu0 0.0
    %128 = vmatprep.subr.mxu0 0.0
    %129 = vmatpush1.msra.mxu0 0.0
    %130 = vmatprep.subr.mxu0 0.0
    %131 = vmatpush1.msra.mxu0 0.0
    %132 = vmatprep.mubr.f32.mxu0 0.0
    %133 = vmatmul.mubr.f32.gmra.mrb[0].mxu0 %v66
    %v134 = vpop.f32.mrb[0].mxu0
    %v135 = vadd.f32 %v62, %v134
    %v136 = vpop.f32.mrb[0].mxu0
    %137 = vdwg.mxu0
    %138 = vst [vmem:[#allocation7] sm:$0xff] %v135
    // Predicated region
    $region22: #{tpu_custom_call.1} parent=1 // pred_check
      _
    $region23: #{tpu_custom_call.1} parent=1 // pred_check_branch
      %140 = sbr.rel (0) target = $region25
    $region24: #{tpu_custom_call.1} parent=1 // pred_region
      %s142 = ssub.s32 128, 128
      %143 = vsyncadd [#allocation4], %s142
      %s145 = sshll.u32 [#allocation7], 4
      %s146 = int_to_ptr.vmem [resolvable:$true] %s145
      %148 = dma.vmem_to_hbm [thread:$0]  %s146, 128, %s3, [#allocation4]
    $region25: #{tpu_custom_call.1} parent=1 // pred_fallthru
      _
    // Predicated region
    $region26: #{tpu_custom_call.1} parent=1 // pred_check
      _
    $region27: #{tpu_custom_call.1} parent=1 // pred_check_branch
      %150 = sbr.rel (0) target = $region29
    $region28: #{tpu_custom_call.1} parent=1 // pred_region
      %151 = dma.done [#allocation4], 128
    $region29: #{tpu_custom_call.1} parent=1 // pred_fallthru
      _
    %152 = vsyncpa [#allocation3], 1
    %153 = vsyncpa [#allocation6], 1
    %154 = vsyncpa [#allocation4], 1

</llo_original>
